<compile_context>
chip_gen: v5e
topology: v5e:2x2
jax: 0.10.0
libtpu: 0.0.40
codegen_flags: <defaults>
</compile_context>

<pallas_src>
import jax
import jax.numpy as jnp
from jax.experimental import pallas as pl
from jax.experimental.pallas import tpu as pltpu

_VMEM_LIMIT_BYTES = 64 * 1024 * 1024  # <= physical VMEM on v5e/v6e (128 MiB) and v7x (64 MiB/TC)


def _xmoment_kernel(x_ref, mom_ref):
    # Per-block x moments for BN batch statistics (conv1 is linear, so these suffice).
    x = x_ref[0].astype(jnp.float32)                       # (C_in, tile_s)
    cin = x.shape[0]
    cols = [jnp.sum(x * x[c:c + 1, :], axis=-1, keepdims=True) for c in range(cin)]  # Gram cols
    cols.append(jnp.sum(x, axis=-1, keepdims=True))        # sum_x as the last column
    mom_ref[0, 0] = jnp.concatenate(cols, axis=1)          # (C_in, C_in + 1) = [Gram | sum_x]


def _fused_kernel(x_ref, w1f_ref, shift_ref, w2_ref, b2_ref, y_ref):
    # Fused conv1 (BN scale pre-folded into W1) -> +shift -> ReLU -> conv2 (+bias).
    x = x_ref[0]                                                        # (C_in, tile_s)
    h = jnp.dot(w1f_ref[...], x, preferred_element_type=jnp.float32)   # (L, tile_s), f32 acc
    h = jnp.maximum(h + shift_ref[...], 0.0)                            # folded BN shift + ReLU
    y = jnp.dot(w2_ref[...], h.astype(w2_ref.dtype),
                preferred_element_type=jnp.float32) + b2_ref[...]       # conv2 + bias
    y_ref[0] = y.astype(y_ref.dtype)                                    # lane-dense store


def _pick_tile_s(S, requested, n_batch):
    t = min(requested, S)
    if S % t != 0:
        # Largest multiple-of-128 divisor of S that fits the request (keeps stores lane-dense).
        t = (t // 128) * 128
        while t >= 128 and S % t != 0:
            t -= 128
        if t < 128:
            # TODO(synk): masked / pl.when-guarded ragged tail for awkward S; fall back to 1 tile.
            t = S
    # v7x shards parallel grid axes across 2 TensorCores: avoid collapsing to a (1, 1) grid.
    if n_batch * (S // t) < 2 and t % 256 == 0:
        t //= 2
    return t


def projection_head_forward(x, params, *, tile_s=8192, eps=1e-5,
                            compute_dtype=jnp.float32, out_dtype=None):
    """x: (N, C_in, D, H, W) NCDHW. Training-mode BatchNorm (biased batch variance)."""
    w1, gamma, beta, w2, b2 = params          # w1: (L, C_in), w2: (C_out, L) — PyTorch orientation
    N, C_in, D, H, W = x.shape
    L = w1.shape[0]
    C_out = w2.shape[0]
    S = D * H * W
    out_dtype = x.dtype if out_dtype is None else out_dtype

    tile_s = _pick_tile_s(S, tile_s, N)
    assert S % tile_s == 0
    ns = S // tile_s
    m_total = N * S

    x3 = x.reshape(N, C_in, S).astype(compute_dtype)   # free reshape; bf16 halves x HBM reads

    # ---- kernel A: per-block x moments -> BN batch statistics (no (M, L) intermediate) ----
    mom_parts = pl.pallas_call(
        _xmoment_kernel,
        out_shape=jax.ShapeDtypeStruct((N, ns, C_in, C_in + 1), jnp.float32),
        grid_spec=pltpu.PrefetchScalarGridSpec(
            num_scalar_prefetch=0,
            grid=(N, ns),
            in_specs=[pl.BlockSpec((1, C_in, tile_s), lambda n, s: (n, 0, s))],
            out_specs=pl.BlockSpec((1, 1, C_in, C_in + 1), lambda n, s: (n, s, 0, 0)),
        ),
        compiler_params=pltpu.CompilerParams(
            dimension_semantics=("parallel", "parallel"),
            vmem_limit_bytes=_VMEM_LIMIT_BYTES),
    )(x3)

    # ---- glue (tiny, XLA): batch stats -> fold BN into conv1 weights + per-channel shift ----
    mom = jnp.sum(mom_parts, axis=(0, 1))                 # (C_in, C_in + 1)
    gram = mom[:, :C_in]                                  # sum over all voxels of x x^T
    mean_x = mom[:, C_in] / m_total                       # (C_in,)
    cov_x = gram / m_total - jnp.outer(mean_x, mean_x)    # biased covariance of x
    mean_h = w1 @ mean_x                                  # (L,)
    # NOTE: single-pass moments in f32; fine for roughly centered activations at these scales.
    var_h = jnp.maximum(jnp.einsum("lc,cd,ld->l", w1, cov_x, w1), 0.0)   # diag(W1 Cov W1^T)
    inv = jax.lax.rsqrt(var_h + eps)
    scale = gamma * inv                                   # (L,)
    shift = beta - mean_h * scale                         # (L,)
    w1f = (w1 * scale[:, None]).astype(compute_dtype)     # BN scale folded into conv1 weights

    # ---- kernel B: fused conv1 -> BN shift -> ReLU -> conv2 (+bias), single pass over x ----
    y3 = pl.pallas_call(
        _fused_kernel,
        out_shape=jax.ShapeDtypeStruct((N, C_out, S), out_dtype),
        grid_spec=pltpu.PrefetchScalarGridSpec(
            num_scalar_prefetch=0,
            grid=(N, ns),
            in_specs=[
                pl.BlockSpec((1, C_in, tile_s), lambda n, s: (n, 0, s)),
                pl.BlockSpec((L, C_in), lambda n, s: (0, 0)),
                pl.BlockSpec((L, 1), lambda n, s: (0, 0)),
                pl.BlockSpec((C_out, L), lambda n, s: (0, 0)),
                pl.BlockSpec((C_out, 1), lambda n, s: (0, 0)),
            ],
            out_specs=pl.BlockSpec((1, C_out, tile_s), lambda n, s: (n, 0, s)),
        ),
        compiler_params=pltpu.CompilerParams(
            dimension_semantics=("parallel", "parallel"),
            vmem_limit_bytes=_VMEM_LIMIT_BYTES),
    )(x3, w1f, shift[:, None], w2.astype(compute_dtype), b2[:, None])

    return y3.reshape(N, C_out, D, H, W)                  # free reshape, no transpose


def init_params(key, in_channels, latent_channels, out_channels):
    k1, k2, k3 = jax.random.split(key, 3)
    w1 = jax.random.normal(k1, (latent_channels, in_channels), jnp.float32)
    w1 = w1 * (1.0 / jnp.sqrt(in_channels))
    gamma = jnp.ones((latent_channels,), jnp.float32)     # BN weight init (fresh module)
    beta = jnp.zeros((latent_channels,), jnp.float32)     # BN bias init
    w2 = jax.random.normal(k2, (out_channels, latent_channels), jnp.float32)
    w2 = w2 * (1.0 / jnp.sqrt(latent_channels))
    b2 = 0.01 * jax.random.normal(k3, (out_channels,), jnp.float32)
    return (w1, gamma, beta, w2, b2)


def reference_forward(x, params, eps=1e-5):
    w1, gamma, beta, w2, b2 = params
    N, C, D, H, W = x.shape
    x3 = x.reshape(N, C, -1)                                      # (N, C_in, S)
    h = jnp.einsum("lc,ncs->nls", w1, x3)                         # conv1
    mean = h.mean(axis=(0, 2), keepdims=True)
    var = ((h - mean) ** 2).mean(axis=(0, 2), keepdims=True)      # biased variance (training BN)
    hn = (h - mean) / jnp.sqrt(var + eps) * gamma[None, :, None] + beta[None, :, None]
    hn = jnp.maximum(hn, 0.0)                                     # ReLU
    y = jnp.einsum("ol,nls->nos", w2, hn) + b2[None, :, None]     # conv2 + bias
    return y.reshape(N, -1, D, H, W)


if __name__ == "__main__":
    # Small shapes consistent with the module: ProjectionHead(in_channels=4,
    # latent_channels=128, out_channels=64) on a (2, 4, 16, 16, 16) NCDHW volume.
    key = jax.random.PRNGKey(0)
    kx, kp = jax.random.split(key)
    N, C_in, D, H, W = 2, 4, 16, 16, 16
    latent, C_out = 128, 64

    x = jax.random.normal(kx, (N, C_in, D, H, W), jnp.float32)
    params = init_params(kp, C_in, latent, C_out)
    y_ref = reference_forward(x, params)

    # f32 path (strict check).
    y = jax.block_until_ready(projection_head_forward(x, params))
    assert y.shape == (N, C_out, D, H, W)
    assert jnp.allclose(y, y_ref, atol=2e-4, rtol=2e-4), "f32 mismatch vs. reference"

    # bf16 MXU path (largest throughput lever on v6e/v7x); loose tolerance for bf16 rounding.
    y_bf16 = jax.block_until_ready(
        projection_head_forward(x, params, compute_dtype=jnp.bfloat16))
    assert jnp.allclose(y_bf16, y_ref, atol=1e-1, rtol=1e-1), "bf16 mismatch vs. reference"

    print("KERNEL_OK")
</pallas_src>

<mosaic_0001>
module attributes {stable_mosaic.version = 11 : i64} {
  func.func @_xmoment_kernel(%arg0: i32, %arg1: i32, %arg2: memref<1x4x4096xf32, #tpu.memory_space<vmem>>, %arg3: memref<1x1x4x5xf32, #tpu.memory_space<vmem>>) attributes {dimension_semantics = [#tpu.dimension_semantics<parallel>, #tpu.dimension_semantics<parallel>], iteration_bounds = array<i64: 2, 1>, scalar_prefetch = 0 : i64, scratch_operands = 0 : i64, tpu.core_type = #tpu.core_type<tc>, window_params = [{transform_indices = @transform_0, window_bounds = array<i64: 1, 4, 4096>}, {transform_indices = @transform_1, window_bounds = array<i64: 1, 1, 4, 5>}]} {
    %c0 = arith.constant 0 : index
    %c0_0 = arith.constant 0 : index
    %c0_1 = arith.constant 0 : index
    %0 = vector.load %arg2[%c0, %c0_0, %c0_1] : memref<1x4x4096xf32, #tpu.memory_space<vmem>>, vector<1x4x4096xf32>
    %1 = vector.shape_cast %0 : vector<1x4x4096xf32> to vector<4x4096xf32>
    %2 = vector.extract_strided_slice %1 {offsets = [0, 0], sizes = [1, 4096], strides = [1, 1]} : vector<4x4096xf32> to vector<1x4096xf32>
    %3 = vector.broadcast %2 : vector<1x4096xf32> to vector<4x4096xf32>
    %4 = arith.mulf %1, %3 : vector<4x4096xf32>
    %cst = arith.constant dense<0.000000e+00> : vector<4xf32>
    %5 = vector.multi_reduction <add>, %4, %cst [1] : vector<4x4096xf32> to vector<4xf32>
    %6 = vector.shape_cast %5 : vector<4xf32> to vector<4x1xf32>
    %7 = vector.extract_strided_slice %1 {offsets = [1, 0], sizes = [1, 4096], strides = [1, 1]} : vector<4x4096xf32> to vector<1x4096xf32>
    %8 = vector.broadcast %7 : vector<1x4096xf32> to vector<4x4096xf32>
    %9 = arith.mulf %1, %8 : vector<4x4096xf32>
    %cst_2 = arith.constant dense<0.000000e+00> : vector<4xf32>
    %10 = vector.multi_reduction <add>, %9, %cst_2 [1] : vector<4x4096xf32> to vector<4xf32>
    %11 = vector.shape_cast %10 : vector<4xf32> to vector<4x1xf32>
    %12 = vector.extract_strided_slice %1 {offsets = [2, 0], sizes = [1, 4096], strides = [1, 1]} : vector<4x4096xf32> to vector<1x4096xf32>
    %13 = vector.broadcast %12 : vector<1x4096xf32> to vector<4x4096xf32>
    %14 = arith.mulf %1, %13 : vector<4x4096xf32>
    %cst_3 = arith.constant dense<0.000000e+00> : vector<4xf32>
    %15 = vector.multi_reduction <add>, %14, %cst_3 [1] : vector<4x4096xf32> to vector<4xf32>
    %16 = vector.shape_cast %15 : vector<4xf32> to vector<4x1xf32>
    %17 = vector.extract_strided_slice %1 {offsets = [3, 0], sizes = [1, 4096], strides = [1, 1]} : vector<4x4096xf32> to vector<1x4096xf32>
    %18 = vector.broadcast %17 : vector<1x4096xf32> to vector<4x4096xf32>
    %19 = arith.mulf %1, %18 : vector<4x4096xf32>
    %cst_4 = arith.constant dense<0.000000e+00> : vector<4xf32>
    %20 = vector.multi_reduction <add>, %19, %cst_4 [1] : vector<4x4096xf32> to vector<4xf32>
    %21 = vector.shape_cast %20 : vector<4xf32> to vector<4x1xf32>
    %cst_5 = arith.constant dense<0.000000e+00> : vector<4xf32>
    %22 = vector.multi_reduction <add>, %1, %cst_5 [1] : vector<4x4096xf32> to vector<4xf32>
    %23 = vector.shape_cast %22 : vector<4xf32> to vector<4x1xf32>
    %24 = tpu.concatenate %6, %11, %16, %21, %23 in 1 : vector<4x1xf32>, vector<4x1xf32>, vector<4x1xf32>, vector<4x1xf32>, vector<4x1xf32> -> vector<4x5xf32>
    %c0_6 = arith.constant 0 : index
    %c0_7 = arith.constant 0 : index
    %c0_8 = arith.constant 0 : index
    %c0_9 = arith.constant 0 : index
    %25 = vector.load %arg3[%c0_6, %c0_7, %c0_8, %c0_9] : memref<1x1x4x5xf32, #tpu.memory_space<vmem>>, vector<1x1x4x5xf32>
    %26 = vector.shape_cast %25 : vector<1x1x4x5xf32> to vector<4x5xf32>
    %27 = vector.shape_cast %24 : vector<4x5xf32> to vector<1x1x4x5xf32>
    tpu.vector_store %arg3[%c0_6, %c0_7, %c0_8, %c0_9], %27 {strides = array<i32>} : memref<1x1x4x5xf32, #tpu.memory_space<vmem>>, vector<1x1x4x5xf32>,
    return
  }
  func.func @transform_0(%arg0: i32, %arg1: i32) -> (i32, i32, i32) {
    %c0_i32 = arith.constant 0 : i32
    %c0_i32_0 = arith.constant 0 : i32
    return %arg0, %c0_i32, %arg1 : i32, i32, i32
  }
  func.func @transform_1(%arg0: i32, %arg1: i32) -> (i32, i32, i32, i32) {
    %c0_i32 = arith.constant 0 : i32
    %c0_i32_0 = arith.constant 0 : i32
    %c0_i32_1 = arith.constant 0 : i32
    return %arg0, %arg1, %c0_i32, %c0_i32_0 : i32, i32, i32, i32
  }
}

</mosaic_0001>

<llo_original>
// kernel: tpu_custom_call.1
$region0: #{tpu_custom_call.1}
  #allocation0 [shape = 'u32[]', space=smem, size = 0x4, offset = 0x4, fixed_abs, tag = 'smem constant byte address 0x4 - core index']
  #allocation1 [shape = 'u32[72,128]{1,0:T(1,128)}', space=vmem, size = 0x9000, scoped, tag = 'internal scratch']
  %s0 = inlined_call_operand.hbm [shape: f32[2,4,4096], index: 0, kind: input, shape index: {}]
  %s1 = inlined_call_operand.hbm [shape: f32[2,1,4,5], index: 1, kind: output, shape index: {}]
  %s2 = sld [smem:[#allocation0]]
  $region41: #{tpu_custom_call.1} parent=0
    _
  %s4 = ssub.s32 1, %s2
  %s5 = scalar_select 0, %s4, %s2
  $region1: #{tpu_custom_call.1} parent=0
    #allocation2 [shape = 'u8[131072]{0}', space=vmem, size = 0x20000, scoped, tag = 'input window, operand 0']
    #allocation3 [shape = 's32[2]{0}', space=sflag, size = 0x8, scoped, tag = 'scoped memory for tpu_custom_call.1']
    #allocation4 [shape = 's32[2]{0}', space=sflag, size = 0x8, scoped, tag = 'scoped memory for tpu_custom_call.1']
    #allocation5 [shape = 'u8[4096]{0}', space=vmem, size = 0x1000, scoped, tag = 'output window, operand 0']
    %6 = vsyncpa [#allocation3], 0
    %s7 = scalar_lea.sflag [#allocation3], 1
    %8 = vsyncpa %s7, 0
    %9 = vsyncpa [#allocation4], 0
    %s10 = scalar_lea.sflag [#allocation4], 1
    %11 = vsyncpa %s10, 0
    loop: start=0, step=1, limit=4
    $region2: #{tpu_custom_call.1} parent=1 // loop_pre_header
      _
    $region3: #{tpu_custom_call.1} parent=1 // loop_header
      %s13 = sphi 0, %s17
      %p14 = scmp.ge.s32.totalorder %s13, 4
      %s20 = sphi 0, %s32
      %s21 = sphi 0, %s28
      %s22 = sphi 0, %s20
      %s23 = sphi 0, %s21
      %s24 = sphi 0, %s22
      %s25 = sphi 0, %s23
      %s37 = sphi 0, %s39
      %s40 = sphi 0, %s37
      %s41 = sphi 0, %s40
      %s57 = sphi 0, %s41
      %s65 = sphi 0, %s67
      %s68 = sphi 0, %s65
      %s69 = sphi 0, %s68
      %s85 = sphi 0, %s69
    $region4: #{tpu_custom_call.1} parent=1 // loop_header_branch
      %16 = sbr.rel (%p14) target = $region8
    $region5: #{tpu_custom_call.1} parent=1 // loop_body
      %s18 = ssub.s32 %s13, 1
      %s19 = ssub.s32 %s13, 2
      %s26 = sadd.s32 1, %s21
      %p27 = scmp.ge.s32.totalorder %s26, 1
      %s28 = scalar_select %p27, 0, %s26
      %s29 = sadd.s32 1, %s20
      %s30 = scalar_select %p27, %s29, %s20
      %p31 = scmp.ge.s32.totalorder %s30, 2
      %s32 = scalar_select %p31, 0, %s30
      %s33 = ssub.s32 %s20, %s32
      %s34 = ssub.s32 %s21, %s28
      %s35 = sor.u32 %s33, %s34
      %p36 = scmp.eq.s32.totalorder %s35, 0
      %s38 = sadd.s32 %s37, 1
      %s39 = scalar_select %p36, %s37, %s38
      %p42 = pneg %p36
      %p43 = scmp.eq.s32.totalorder %s13, 1
      %p44 = por %p42, %p43
      %p45 = scmp.ne.s32.totalorder %s37, %s40
      %p46 = scmp.eq.s32.totalorder %s13, 0
      %p47 = por %p45, %p46
      %p48 = scmp.ne.s32.totalorder %s37, %s40
      %p49 = scmp.eq.s32.totalorder %s18, 1
      %p50 = por %p48, %p49
      %p51 = scmp.ne.s32.totalorder %s40, %s41
      %p52 = scmp.eq.s32.totalorder %s18, 0
      %p53 = por %p51, %p52
      %p54 = scmp.ne.s32.totalorder %s40, %s41
      %p55 = scmp.eq.s32.totalorder %s19, 1
      %p56 = por %p54, %p55
      %p58 = scmp.ne.s32.totalorder %s41, %s57
      %p59 = scmp.eq.s32.totalorder %s19, 0
      %p60 = por %p58, %p59
      %s61 = ssub.s32 %s20, %s32
      %s62 = ssub.s32 %s21, %s28
      %s63 = sor.u32 %s61, %s62
      %p64 = scmp.eq.s32.totalorder %s63, 0
      %s66 = sadd.s32 %s65, 1
      %s67 = scalar_select %p64, %s65, %s66
      %p70 = pneg %p64
      %p71 = scmp.eq.s32.totalorder %s13, 1
      %p72 = por %p70, %p71
      %p73 = scmp.ne.s32.totalorder %s65, %s68
      %p74 = scmp.eq.s32.totalorder %s13, 0
      %p75 = por %p73, %p74
      %p76 = scmp.ne.s32.totalorder %s65, %s68
      %p77 = scmp.eq.s32.totalorder %s18, 1
      %p78 = por %p76, %p77
      %p79 = scmp.ne.s32.totalorder %s68, %s69
      %p80 = scmp.eq.s32.totalorder %s18, 0
      %p81 = por %p79, %p80
      %p82 = scmp.ne.s32.totalorder %s68, %s69
      %p83 = scmp.eq.s32.totalorder %s19, 1
      %p84 = por %p82, %p83
      %p86 = scmp.ne.s32.totalorder %s69, %s85
      %p87 = scmp.eq.s32.totalorder %s19, 0
      %p88 = por %p86, %p87
      %p89 = scmp.le.s32.totalorder 1, %s13
      %p90 = scmp.lt.s32.totalorder %s13, 3
      %p91 = pnand %p89, %p90
      %p92 = pneg %p91
      // Predicated region
      $region9: #{tpu_custom_call.1} parent=5 // pred_check
        _
      $region10: #{tpu_custom_call.1} parent=5 // pred_check_branch
        %94 = sbr.rel (%p91) target = $region12
      $region11: #{tpu_custom_call.1} parent=5 // pred_region
        %s95 = ssub.s32 %s13, 1
      $region12: #{tpu_custom_call.1} parent=5 // pred_fallthru
        _
      %p96 = scmp.lt.s32.totalorder %s13, 2
      // Predicated region
      $region13: #{tpu_custom_call.1} parent=5 // pred_check
        %p97 = pneg %p96
      $region14: #{tpu_custom_call.1} parent=5 // pred_check_branch
        %99 = sbr.rel (%p97) target = $region16
      $region15: #{tpu_custom_call.1} parent=5 // pred_region
        // Predicated region
        $region17: #{tpu_custom_call.1} parent=15 // pred_check
          %p100 = pneg %p47
        $region18: #{tpu_custom_call.1} parent=15 // pred_check_branch
          %102 = sbr.rel (%p100) target = $region20
        $region19: #{tpu_custom_call.1} parent=15 // pred_region
          %s103 = sand.u32 %s37, 1
          %s104 = scalar_lea.sflag [#allocation3], %s103
          %s105 = sand.u32 %s37, 1
          %s106 = smul.addr %s105, 128
          %s107 = scalar_lea.vmem [#allocation2], %s106
          %s108 = smul.u32 32, %s21
          %110 = vsyncadd %s104, 0
          %s111 = smul.addr %s20, 32
          %s112 = sadd.s32 %s108, %s111
          %s113 = smul.addr %s112, 4
          %s114 = scalar_lea.hbm %s0, %s113
          %s116 = sshll.u32 %s114, 4
          %s117 = int_to_ptr.hbm [resolvable:$true] %s116
          %s118 = sshll.u32 %s107, 4
          %s119 = int_to_ptr.vmem [resolvable:$true] %s118
          %121 = dma.hbm_to_vmem [thread:$0]  %s117, 2048, %s119, %s104
        $region20: #{tpu_custom_call.1} parent=15 // pred_fallthru
          _
      $region16: #{tpu_custom_call.1} parent=5 // pred_fallthru
        _
      %p122 = scmp.le.s32.totalorder 1, %s13
      %p123 = scmp.lt.s32.totalorder %s13, 3
      %p124 = pnand %p122, %p123
      %p125 = pneg %p124
      // Predicated region
      $region21: #{tpu_custom_call.1} parent=5 // pred_check
        _
      $region22: #{tpu_custom_call.1} parent=5 // pred_check_branch
        %127 = sbr.rel (%p124) target = $region24
      $region23: #{tpu_custom_call.1} parent=5 // pred_region
        %s128 = ssub.s32 %s13, 1
        %s129 = sand.u32 %s40, 1
        %s130 = scalar_lea.sflag [#allocation3], %s129
        %s131 = sand.u32 %s40, 1
        %s132 = smul.addr %s131, 128
        %s133 = scalar_lea.vmem [#allocation2], %s132
        // Predicated region
        $region25: #{tpu_custom_call.1} parent=23 // pred_check
          %p134 = pneg %p53
        $region26: #{tpu_custom_call.1} parent=23 // pred_check_branch
          %136 = sbr.rel (%p134) target = $region28
        $region27: #{tpu_custom_call.1} parent=23 // pred_region
          %138 = dma.done %s130, 2048
        $region28: #{tpu_custom_call.1} parent=23 // pred_fallthru
          _
        %s139 = sand.u32 %s40, 1
        %s140 = scalar_lea.sflag [#allocation3], %s139
        %s141 = sand.u32 %s40, 1
        %s142 = smul.addr %s141, 128
        %s143 = scalar_lea.vmem [#allocation2], %s142
        %p144 = pneg %p53
        %p145 = pneg %p50
        %p146 = pneg %p81
        %p147 = pneg %p78
        %s148 = sand.u32 %s68, 1
        %s149 = scalar_lea.sflag [#allocation4], %s148
        %s150 = sand.u32 %s68, 1
        %s151 = smul.addr %s150, 4
        %s152 = scalar_lea.vmem [#allocation5], %s151
        %s153 = smul.u32 32, %s23
        %v154 = vld [vmem:[%s133] sm:$0xff]
        %v155 = vld [vmem:[%s133 + $0x8] sm:$0xff]
        %v156 = vld [vmem:[%s133 + $0x10] sm:$0xff]
        %v157 = vld [vmem:[%s133 + $0x18] sm:$0xff]
        %v158 = vld [vmem:[%s133 + $0x20] sm:$0xff]
        %v159 = vld [vmem:[%s133 + $0x28] sm:$0xff]
        %v160 = vld [vmem:[%s133 + $0x30] sm:$0xff]
        %v161 = vld [vmem:[%s133 + $0x38] sm:$0xff]
        %v162 = vld [vmem:[%s133 + $0x40] sm:$0xff]
        %v163 = vld [vmem:[%s133 + $0x48] sm:$0xff]
        %v164 = vld [vmem:[%s133 + $0x50] sm:$0xff]
        %v165 = vld [vmem:[%s133 + $0x58] sm:$0xff]
        %v166 = vld [vmem:[%s133 + $0x60] sm:$0xff]
        %v167 = vld [vmem:[%s133 + $0x68] sm:$0xff]
        %v168 = vld [vmem:[%s133 + $0x70] sm:$0xff]
        %v169 = vld [vmem:[%s133 + $0x78] sm:$0xff]
        %v186 = vperm.slane %v154, 0
        %v187 = vperm.slane %v154, 4
        %v188 = vperm.slane %v155, 0
        %v189 = vperm.slane %v155, 4
        %v190 = vperm.slane %v156, 0
        %v191 = vperm.slane %v156, 4
        %v192 = vperm.slane %v157, 0
        %v193 = vperm.slane %v157, 4
        %v194 = vperm.slane %v158, 0
        %v195 = vperm.slane %v158, 4
        %v196 = vperm.slane %v159, 0
        %v197 = vperm.slane %v159, 4
        %v198 = vperm.slane %v160, 0
        %v199 = vperm.slane %v160, 4
        %v200 = vperm.slane %v161, 0
        %v201 = vperm.slane %v161, 4
        %v202 = vperm.slane %v162, 0
        %v203 = vperm.slane %v162, 4
        %v204 = vperm.slane %v163, 0
        %v205 = vperm.slane %v163, 4
        %v206 = vperm.slane %v164, 0
        %v207 = vperm.slane %v164, 4
        %v208 = vperm.slane %v165, 0
        %v209 = vperm.slane %v165, 4
        %v210 = vperm.slane %v166, 0
        %v211 = vperm.slane %v166, 4
        %v212 = vperm.slane %v167, 0
        %v213 = vperm.slane %v167, 4
        %v214 = vperm.slane %v168, 0
        %v215 = vperm.slane %v168, 4
        %v216 = vperm.slane %v169, 0
        %v217 = vperm.slane %v169, 4
        %v250 = vperm.slane %v186, 0
        %v251 = vperm.slane %v187, 0
        %v252 = vperm.slane %v188, 0
        %v253 = vperm.slane %v189, 0
        %v254 = vperm.slane %v190, 0
        %v255 = vperm.slane %v191, 0
        %v256 = vperm.slane %v192, 0
        %v257 = vperm.slane %v193, 0
        %v258 = vperm.slane %v194, 0
        %v259 = vperm.slane %v195, 0
        %v260 = vperm.slane %v196, 0
        %v261 = vperm.slane %v197, 0
        %v262 = vperm.slane %v198, 0
        %v263 = vperm.slane %v199, 0
        %v264 = vperm.slane %v200, 0
        %v265 = vperm.slane %v201, 0
        %v266 = vperm.slane %v202, 0
        %v267 = vperm.slane %v203, 0
        %v268 = vperm.slane %v204, 0
        %v269 = vperm.slane %v205, 0
        %v270 = vperm.slane %v206, 0
        %v271 = vperm.slane %v207, 0
        %v272 = vperm.slane %v208, 0
        %v273 = vperm.slane %v209, 0
        %v274 = vperm.slane %v210, 0
        %v275 = vperm.slane %v211, 0
        %v276 = vperm.slane %v212, 0
        %v277 = vperm.slane %v213, 0
        %v278 = vperm.slane %v214, 0
        %v279 = vperm.slane %v215, 0
        %v280 = vperm.slane %v216, 0
        %v281 = vperm.slane %v217, 0
        %v314 = vrot.slane %v251, 4
        %v315 = vrot.slane %v253, 4
        %v316 = vrot.slane %v255, 4
        %v317 = vrot.slane %v257, 4
        %v318 = vrot.slane %v259, 4
        %v319 = vrot.slane %v261, 4
        %v320 = vrot.slane %v263, 4
        %v321 = vrot.slane %v265, 4
        %v322 = vrot.slane %v267, 4
        %v323 = vrot.slane %v269, 4
        %v324 = vrot.slane %v271, 4
        %v325 = vrot.slane %v273, 4
        %v326 = vrot.slane %v275, 4
        %v327 = vrot.slane %v277, 4
        %v328 = vrot.slane %v279, 4
        %v329 = vrot.slane %v281, 4
        %vm330 = vcmask 1043456
        %v331 = vsel %vm330, %v250, %v314
        %v332 = vsel %vm330, %v252, %v315
        %v333 = vsel %vm330, %v254, %v316
        %v334 = vsel %vm330, %v256, %v317
        %v335 = vsel %vm330, %v258, %v318
        %v336 = vsel %vm330, %v260, %v319
        %v337 = vsel %vm330, %v262, %v320
        %v338 = vsel %vm330, %v264, %v321
        %v339 = vsel %vm330, %v266, %v322
        %v340 = vsel %vm330, %v268, %v323
        %v341 = vsel %vm330, %v270, %v324
        %v342 = vsel %vm330, %v272, %v325
        %v343 = vsel %vm330, %v274, %v326
        %v344 = vsel %vm330, %v276, %v327
        %v345 = vsel %vm330, %v278, %v328
        %v346 = vsel %vm330, %v280, %v329
        %v363 = vmul.f32 %v154, %v331
        %v364 = vmul.f32 %v155, %v332
        %v365 = vmul.f32 %v156, %v333
        %v366 = vmul.f32 %v157, %v334
        %v367 = vmul.f32 %v158, %v335
        %v368 = vmul.f32 %v159, %v336
        %v369 = vmul.f32 %v160, %v337
        %v370 = vmul.f32 %v161, %v338
        %v371 = vmul.f32 %v162, %v339
        %v372 = vmul.f32 %v163, %v340
        %v373 = vmul.f32 %v164, %v341
        %v374 = vmul.f32 %v165, %v342
        %v375 = vmul.f32 %v166, %v343
        %v376 = vmul.f32 %v167, %v344
        %v377 = vmul.f32 %v168, %v345
        %v378 = vmul.f32 %v169, %v346
        %395 = vst [vmem:[#allocation1] ss:$2 sm:$0xff] %v363
        %s396 = scalar_lea.vmem [#allocation1], 16
        %397 = vst [vmem:[%s396] ss:$2 sm:$0xff] %v364
        %s398 = scalar_lea.vmem [#allocation1], 32
        %399 = vst [vmem:[%s398] ss:$2 sm:$0xff] %v365
        %s400 = scalar_lea.vmem [#allocation1], 48
        %401 = vst [vmem:[%s400] ss:$2 sm:$0xff] %v366
        %v402 = vld.sshfl [vmem:[#allocation1] sm:$0xff pattern:$0x75316420]
        %v403 = vld.sshfl [vmem:[#allocation1 + $0x8] sm:$0xff pattern:$0x75316420]
        %v404 = vld.sshfl [vmem:[#allocation1 + $0x10] sm:$0xff pattern:$0x75316420]
        %v405 = vld.sshfl [vmem:[#allocation1 + $0x18] sm:$0xff pattern:$0x75316420]
        %v406 = vld.sshfl [vmem:[#allocation1 + $0x20] sm:$0xff pattern:$0x75316420]
        %v407 = vld.sshfl [vmem:[#allocation1 + $0x28] sm:$0xff pattern:$0x75316420]
        %v408 = vld.sshfl [vmem:[#allocation1 + $0x30] sm:$0xff pattern:$0x75316420]
        %v409 = vld.sshfl [vmem:[#allocation1 + $0x38] sm:$0xff pattern:$0x75316420]
        %410 = vst [vmem:[#allocation1] ss:$2 sm:$0xff] %v367
        %411 = vst [vmem:[%s396] ss:$2 sm:$0xff] %v368
        %412 = vst [vmem:[%s398] ss:$2 sm:$0xff] %v369
        %413 = vst [vmem:[%s400] ss:$2 sm:$0xff] %v370
        %v414 = vld.sshfl [vmem:[#allocation1] sm:$0xff pattern:$0x75316420]
        %v415 = vld.sshfl [vmem:[#allocation1 + $0x8] sm:$0xff pattern:$0x75316420]
        %v416 = vld.sshfl [vmem:[#allocation1 + $0x10] sm:$0xff pattern:$0x75316420]
        %v417 = vld.sshfl [vmem:[#allocation1 + $0x18] sm:$0xff pattern:$0x75316420]
        %v418 = vld.sshfl [vmem:[#allocation1 + $0x20] sm:$0xff pattern:$0x75316420]
        %v419 = vld.sshfl [vmem:[#allocation1 + $0x28] sm:$0xff pattern:$0x75316420]
        %v420 = vld.sshfl [vmem:[#allocation1 + $0x30] sm:$0xff pattern:$0x75316420]
        %v421 = vld.sshfl [vmem:[#allocation1 + $0x38] sm:$0xff pattern:$0x75316420]
        %422 = vst [vmem:[#allocation1] ss:$2 sm:$0xff] %v371
        %423 = vst [vmem:[%s396] ss:$2 sm:$0xff] %v372
        %424 = vst [vmem:[%s398] ss:$2 sm:$0xff] %v373
        %425 = vst [vmem:[%s400] ss:$2 sm:$0xff] %v374
        %v426 = vld.sshfl [vmem:[#allocation1] sm:$0xff pattern:$0x75316420]
        %v427 = vld.sshfl [vmem:[#allocation1 + $0x8] sm:$0xff pattern:$0x75316420]
        %v428 = vld.sshfl [vmem:[#allocation1 + $0x10] sm:$0xff pattern:$0x75316420]
        %v429 = vld.sshfl [vmem:[#allocation1 + $0x18] sm:$0xff pattern:$0x75316420]
        %v430 = vld.sshfl [vmem:[#allocation1 + $0x20] sm:$0xff pattern:$0x75316420]
        %v431 = vld.sshfl [vmem:[#allocation1 + $0x28] sm:$0xff pattern:$0x75316420]
        %v432 = vld.sshfl [vmem:[#allocation1 + $0x30] sm:$0xff pattern:$0x75316420]
        %v433 = vld.sshfl [vmem:[#allocation1 + $0x38] sm:$0xff pattern:$0x75316420]
        %434 = vst [vmem:[#allocation1] ss:$2 sm:$0xff] %v375
        %435 = vst [vmem:[%s396] ss:$2 sm:$0xff] %v376
        %436 = vst [vmem:[%s398] ss:$2 sm:$0xff] %v377
        %437 = vst [vmem:[%s400] ss:$2 sm:$0xff] %v378
        %v438 = vld.sshfl [vmem:[#allocation1] sm:$0xff pattern:$0x75316420]
        %v439 = vld.sshfl [vmem:[#allocation1 + $0x8] sm:$0xff pattern:$0x75316420]
        %v440 = vld.sshfl [vmem:[#allocation1 + $0x10] sm:$0xff pattern:$0x75316420]
        %v441 = vld.sshfl [vmem:[#allocation1 + $0x18] sm:$0xff pattern:$0x75316420]
        %v442 = vld.sshfl [vmem:[#allocation1 + $0x20] sm:$0xff pattern:$0x75316420]
        %v443 = vld.sshfl [vmem:[#allocation1 + $0x28] sm:$0xff pattern:$0x75316420]
        %v444 = vld.sshfl [vmem:[#allocation1 + $0x30] sm:$0xff pattern:$0x75316420]
        %v445 = vld.sshfl [vmem:[#allocation1 + $0x38] sm:$0xff pattern:$0x75316420]
        %v478 = vsel %vm330, %v402, 0.0
        %v479 = vsel %vm330, %v403, 0.0
        %v480 = vadd.f32 %v478, %v479
        %v481 = vsel %vm330, %v404, 0.0
        %v482 = vadd.f32 %v480, %v481
        %v483 = vsel %vm330, %v405, 0.0
        %v484 = vadd.f32 %v482, %v483
        %v485 = vsel %vm330, %v406, 0.0
        %v486 = vadd.f32 %v484, %v485
        %v487 = vsel %vm330, %v407, 0.0
        %v488 = vadd.f32 %v486, %v487
        %v489 = vsel %vm330, %v408, 0.0
        %v490 = vadd.f32 %v488, %v489
        %v491 = vsel %vm330, %v409, 0.0
        %v492 = vadd.f32 %v490, %v491
        %v493 = vsel %vm330, %v414, 0.0
        %v494 = vadd.f32 %v492, %v493
        %v495 = vsel %vm330, %v415, 0.0
        %v496 = vadd.f32 %v494, %v495
        %v497 = vsel %vm330, %v416, 0.0
        %v498 = vadd.f32 %v496, %v497
        %v499 = vsel %vm330, %v417, 0.0
        %v500 = vadd.f32 %v498, %v499
        %v501 = vsel %vm330, %v418, 0.0
        %v502 = vadd.f32 %v500, %v501
        %v503 = vsel %vm330, %v419, 0.0
        %v504 = vadd.f32 %v502, %v503
        %v505 = vsel %vm330, %v420, 0.0
        %v506 = vadd.f32 %v504, %v505
        %v507 = vsel %vm330, %v421, 0.0
        %v508 = vadd.f32 %v506, %v507
        %v509 = vsel %vm330, %v426, 0.0
        %v510 = vadd.f32 %v508, %v509
        %v511 = vsel %vm330, %v427, 0.0
        %v512 = vadd.f32 %v510, %v511
        %v513 = vsel %vm330, %v428, 0.0
        %v514 = vadd.f32 %v512, %v513
        %v515 = vsel %vm330, %v429, 0.0
        %v516 = vadd.f32 %v514, %v515
        %v517 = vsel %vm330, %v430, 0.0
        %v518 = vadd.f32 %v516, %v517
        %v519 = vsel %vm330, %v431, 0.0
        %v520 = vadd.f32 %v518, %v519
        %v521 = vsel %vm330, %v432, 0.0
        %v522 = vadd.f32 %v520, %v521
        %v523 = vsel %vm330, %v433, 0.0
        %v524 = vadd.f32 %v522, %v523
        %v525 = vsel %vm330, %v438, 0.0
        %v526 = vadd.f32 %v524, %v525
        %v527 = vsel %vm330, %v439, 0.0
        %v528 = vadd.f32 %v526, %v527
        %v529 = vsel %vm330, %v440, 0.0
        %v530 = vadd.f32 %v528, %v529
        %v531 = vsel %vm330, %v441, 0.0
        %v532 = vadd.f32 %v530, %v531
        %v533 = vsel %vm330, %v442, 0.0
        %v534 = vadd.f32 %v532, %v533
        %v535 = vsel %vm330, %v443, 0.0
        %v536 = vadd.f32 %v534, %v535
        %v537 = vsel %vm330, %v444, 0.0
        %v538 = vadd.f32 %v536, %v537
        %v539 = vsel %vm330, %v445, 0.0
        %v540 = vadd.f32 %v538, %v539
        %541 = vadd.xlane.f32.xlu0 %v540
        %v542 = vpop.xlane.xlu0 %541
        %v543 = vperm.slane %v154, 1
        %v544 = vperm.slane %v154, 5
        %v545 = vperm.slane %v155, 1
        %v546 = vperm.slane %v155, 5
        %v547 = vperm.slane %v156, 1
        %v548 = vperm.slane %v156, 5
        %v549 = vperm.slane %v157, 1
        %v550 = vperm.slane %v157, 5
        %v551 = vperm.slane %v158, 1
        %v552 = vperm.slane %v158, 5
        %v553 = vperm.slane %v159, 1
        %v554 = vperm.slane %v159, 5
        %v555 = vperm.slane %v160, 1
        %v556 = vperm.slane %v160, 5
        %v557 = vperm.slane %v161, 1
        %v558 = vperm.slane %v161, 5
        %v559 = vperm.slane %v162, 1
        %v560 = vperm.slane %v162, 5
        %v561 = vperm.slane %v163, 1
        %v562 = vperm.slane %v163, 5
        %v563 = vperm.slane %v164, 1
        %v564 = vperm.slane %v164, 5
        %v565 = vperm.slane %v165, 1
        %v566 = vperm.slane %v165, 5
        %v567 = vperm.slane %v166, 1
        %v568 = vperm.slane %v166, 5
        %v569 = vperm.slane %v167, 1
        %v570 = vperm.slane %v167, 5
        %v571 = vperm.slane %v168, 1
        %v572 = vperm.slane %v168, 5
        %v573 = vperm.slane %v169, 1
        %v574 = vperm.slane %v169, 5
        %v607 = vperm.slane %v543, 1
        %v608 = vperm.slane %v544, 1
        %v609 = vperm.slane %v545, 1
        %v610 = vperm.slane %v546, 1
        %v611 = vperm.slane %v547, 1
        %v612 = vperm.slane %v548, 1
        %v613 = vperm.slane %v549, 1
        %v614 = vperm.slane %v550, 1
        %v615 = vperm.slane %v551, 1
        %v616 = vperm.slane %v552, 1
        %v617 = vperm.slane %v553, 1
        %v618 = vperm.slane %v554, 1
        %v619 = vperm.slane %v555, 1
        %v620 = vperm.slane %v556, 1
        %v621 = vperm.slane %v557, 1
        %v622 = vperm.slane %v558, 1
        %v623 = vperm.slane %v559, 1
        %v624 = vperm.slane %v560, 1
        %v625 = vperm.slane %v561, 1
        %v626 = vperm.slane %v562, 1
        %v627 = vperm.slane %v563, 1
        %v628 = vperm.slane %v564, 1
        %v629 = vperm.slane %v565, 1
        %v630 = vperm.slane %v566, 1
        %v631 = vperm.slane %v567, 1
        %v632 = vperm.slane %v568, 1
        %v633 = vperm.slane %v569, 1
        %v634 = vperm.slane %v570, 1
        %v635 = vperm.slane %v571, 1
        %v636 = vperm.slane %v572, 1
        %v637 = vperm.slane %v573, 1
        %v638 = vperm.slane %v574, 1
        %v671 = vrot.slane %v608, 4
        %v672 = vrot.slane %v610, 4
        %v673 = vrot.slane %v612, 4
        %v674 = vrot.slane %v614, 4
        %v675 = vrot.slane %v616, 4
        %v676 = vrot.slane %v618, 4
        %v677 = vrot.slane %v620, 4
        %v678 = vrot.slane %v622, 4
        %v679 = vrot.slane %v624, 4
        %v680 = vrot.slane %v626, 4
        %v681 = vrot.slane %v628, 4
        %v682 = vrot.slane %v630, 4
        %v683 = vrot.slane %v632, 4
        %v684 = vrot.slane %v634, 4
        %v685 = vrot.slane %v636, 4
        %v686 = vrot.slane %v638, 4
        %v687 = vsel %vm330, %v607, %v671
        %v688 = vsel %vm330, %v609, %v672
        %v689 = vsel %vm330, %v611, %v673
        %v690 = vsel %vm330, %v613, %v674
        %v691 = vsel %vm330, %v615, %v675
        %v692 = vsel %vm330, %v617, %v676
        %v693 = vsel %vm330, %v619, %v677
        %v694 = vsel %vm330, %v621, %v678
        %v695 = vsel %vm330, %v623, %v679
        %v696 = vsel %vm330, %v625, %v680
        %v697 = vsel %vm330, %v627, %v681
        %v698 = vsel %vm330, %v629, %v682
        %v699 = vsel %vm330, %v631, %v683
        %v700 = vsel %vm330, %v633, %v684
        %v701 = vsel %vm330, %v635, %v685
        %v702 = vsel %vm330, %v637, %v686
        %v719 = vmul.f32 %v154, %v687
        %v720 = vmul.f32 %v155, %v688
        %v721 = vmul.f32 %v156, %v689
        %v722 = vmul.f32 %v157, %v690
        %v723 = vmul.f32 %v158, %v691
        %v724 = vmul.f32 %v159, %v692
        %v725 = vmul.f32 %v160, %v693
        %v726 = vmul.f32 %v161, %v694
        %v727 = vmul.f32 %v162, %v695
        %v728 = vmul.f32 %v163, %v696
        %v729 = vmul.f32 %v164, %v697
        %v730 = vmul.f32 %v165, %v698
        %v731 = vmul.f32 %v166, %v699
        %v732 = vmul.f32 %v167, %v700
        %v733 = vmul.f32 %v168, %v701
        %v734 = vmul.f32 %v169, %v702
        %751 = vst [vmem:[#allocation1] ss:$2 sm:$0xff] %v719
        %s752 = scalar_lea.vmem [#allocation1], 16
        %753 = vst [vmem:[%s752] ss:$2 sm:$0xff] %v720
        %s754 = scalar_lea.vmem [#allocation1], 32
        %755 = vst [vmem:[%s754] ss:$2 sm:$0xff] %v721
        %s756 = scalar_lea.vmem [#allocation1], 48
        %757 = vst [vmem:[%s756] ss:$2 sm:$0xff] %v722
        %v758 = vld.sshfl [vmem:[#allocation1] sm:$0xff pattern:$0x75316420]
        %v759 = vld.sshfl [vmem:[#allocation1 + $0x8] sm:$0xff pattern:$0x75316420]
        %v760 = vld.sshfl [vmem:[#allocation1 + $0x10] sm:$0xff pattern:$0x75316420]
        %v761 = vld.sshfl [vmem:[#allocation1 + $0x18] sm:$0xff pattern:$0x75316420]
        %v762 = vld.sshfl [vmem:[#allocation1 + $0x20] sm:$0xff pattern:$0x75316420]
        %v763 = vld.sshfl [vmem:[#allocation1 + $0x28] sm:$0xff pattern:$0x75316420]
        %v764 = vld.sshfl [vmem:[#allocation1 + $0x30] sm:$0xff pattern:$0x75316420]
        %v765 = vld.sshfl [vmem:[#allocation1 + $0x38] sm:$0xff pattern:$0x75316420]
        %766 = vst [vmem:[#allocation1] ss:$2 sm:$0xff] %v723
        %767 = vst [vmem:[%s752] ss:$2 sm:$0xff] %v724
        %768 = vst [vmem:[%s754] ss:$2 sm:$0xff] %v725
        %769 = vst [vmem:[%s756] ss:$2 sm:$0xff] %v726
        %v770 = vld.sshfl [vmem:[#allocation1] sm:$0xff pattern:$0x75316420]
        %v771 = vld.sshfl [vmem:[#allocation1 + $0x8] sm:$0xff pattern:$0x75316420]
        %v772 = vld.sshfl [vmem:[#allocation1 + $0x10] sm:$0xff pattern:$0x75316420]
        %v773 = vld.sshfl [vmem:[#allocation1 + $0x18] sm:$0xff pattern:$0x75316420]
        %v774 = vld.sshfl [vmem:[#allocation1 + $0x20] sm:$0xff pattern:$0x75316420]
        %v775 = vld.sshfl [vmem:[#allocation1 + $0x28] sm:$0xff pattern:$0x75316420]
        %v776 = vld.sshfl [vmem:[#allocation1 + $0x30] sm:$0xff pattern:$0x75316420]
        %v777 = vld.sshfl [vmem:[#allocation1 + $0x38] sm:$0xff pattern:$0x75316420]
        %778 = vst [vmem:[#allocation1] ss:$2 sm:$0xff] %v727
        %779 = vst [vmem:[%s752] ss:$2 sm:$0xff] %v728
        %780 = vst [vmem:[%s754] ss:$2 sm:$0xff] %v729
        %781 = vst [vmem:[%s756] ss:$2 sm:$0xff] %v730
        %v782 = vld.sshfl [vmem:[#allocation1] sm:$0xff pattern:$0x75316420]
        %v783 = vld.sshfl [vmem:[#allocation1 + $0x8] sm:$0xff pattern:$0x75316420]
        %v784 = vld.sshfl [vmem:[#allocation1 + $0x10] sm:$0xff pattern:$0x75316420]
        %v785 = vld.sshfl [vmem:[#allocation1 + $0x18] sm:$0xff pattern:$0x75316420]
        %v786 = vld.sshfl [vmem:[#allocation1 + $0x20] sm:$0xff pattern:$0x75316420]
        %v787 = vld.sshfl [vmem:[#allocation1 + $0x28] sm:$0xff pattern:$0x75316420]
        %v788 = vld.sshfl [vmem:[#allocation1 + $0x30] sm:$0xff pattern:$0x75316420]
        %v789 = vld.sshfl [vmem:[#allocation1 + $0x38] sm:$0xff pattern:$0x75316420]
        %790 = vst [vmem:[#allocation1] ss:$2 sm:$0xff] %v731
        %791 = vst [vmem:[%s752] ss:$2 sm:$0xff] %v732
        %792 = vst [vmem:[%s754] ss:$2 sm:$0xff] %v733
        %793 = vst [vmem:[%s756] ss:$2 sm:$0xff] %v734
        %v794 = vld.sshfl [vmem:[#allocation1] sm:$0xff pattern:$0x75316420]
        %v795 = vld.sshfl [vmem:[#allocation1 + $0x8] sm:$0xff pattern:$0x75316420]
        %v796 = vld.sshfl [vmem:[#allocation1 + $0x10] sm:$0xff pattern:$0x75316420]
        %v797 = vld.sshfl [vmem:[#allocation1 + $0x18] sm:$0xff pattern:$0x75316420]
        %v798 = vld.sshfl [vmem:[#allocation1 + $0x20] sm:$0xff pattern:$0x75316420]
        %v799 = vld.sshfl [vmem:[#allocation1 + $0x28] sm:$0xff pattern:$0x75316420]
        %v800 = vld.sshfl [vmem:[#allocation1 + $0x30] sm:$0xff pattern:$0x75316420]
        %v801 = vld.sshfl [vmem:[#allocation1 + $0x38] sm:$0xff pattern:$0x75316420]
        %v834 = vsel %vm330, %v758, 0.0
        %v835 = vsel %vm330, %v759, 0.0
        %v836 = vadd.f32 %v834, %v835
        %v837 = vsel %vm330, %v760, 0.0
        %v838 = vadd.f32 %v836, %v837
        %v839 = vsel %vm330, %v761, 0.0
        %v840 = vadd.f32 %v838, %v839
        %v841 = vsel %vm330, %v762, 0.0
        %v842 = vadd.f32 %v840, %v841
        %v843 = vsel %vm330, %v763, 0.0
        %v844 = vadd.f32 %v842, %v843
        %v845 = vsel %vm330, %v764, 0.0
        %v846 = vadd.f32 %v844, %v845
        %v847 = vsel %vm330, %v765, 0.0
        %v848 = vadd.f32 %v846, %v847
        %v849 = vsel %vm330, %v770, 0.0
        %v850 = vadd.f32 %v848, %v849
        %v851 = vsel %vm330, %v771, 0.0
        %v852 = vadd.f32 %v850, %v851
        %v853 = vsel %vm330, %v772, 0.0
        %v854 = vadd.f32 %v852, %v853
        %v855 = vsel %vm330, %v773, 0.0
        %v856 = vadd.f32 %v854, %v855
        %v857 = vsel %vm330, %v774, 0.0
        %v858 = vadd.f32 %v856, %v857
        %v859 = vsel %vm330, %v775, 0.0
        %v860 = vadd.f32 %v858, %v859
        %v861 = vsel %vm330, %v776, 0.0
        %v862 = vadd.f32 %v860, %v861
        %v863 = vsel %vm330, %v777, 0.0
        %v864 = vadd.f32 %v862, %v863
        %v865 = vsel %vm330, %v782, 0.0
        %v866 = vadd.f32 %v864, %v865
        %v867 = vsel %vm330, %v783, 0.0
        %v868 = vadd.f32 %v866, %v867
        %v869 = vsel %vm330, %v784, 0.0
        %v870 = vadd.f32 %v868, %v869
        %v871 = vsel %vm330, %v785, 0.0
        %v872 = vadd.f32 %v870, %v871
        %v873 = vsel %vm330, %v786, 0.0
        %v874 = vadd.f32 %v872, %v873
        %v875 = vsel %vm330, %v787, 0.0
        %v876 = vadd.f32 %v874, %v875
        %v877 = vsel %vm330, %v788, 0.0
        %v878 = vadd.f32 %v876, %v877
        %v879 = vsel %vm330, %v789, 0.0
        %v880 = vadd.f32 %v878, %v879
        %v881 = vsel %vm330, %v794, 0.0
        %v882 = vadd.f32 %v880, %v881
        %v883 = vsel %vm330, %v795, 0.0
        %v884 = vadd.f32 %v882, %v883
        %v885 = vsel %vm330, %v796, 0.0
        %v886 = vadd.f32 %v884, %v885
        %v887 = vsel %vm330, %v797, 0.0
        %v888 = vadd.f32 %v886, %v887
        %v889 = vsel %vm330, %v798, 0.0
        %v890 = vadd.f32 %v888, %v889
        %v891 = vsel %vm330, %v799, 0.0
        %v892 = vadd.f32 %v890, %v891
        %v893 = vsel %vm330, %v800, 0.0
        %v894 = vadd.f32 %v892, %v893
        %v895 = vsel %vm330, %v801, 0.0
        %v896 = vadd.f32 %v894, %v895
        %897 = vadd.xlane.f32.xlu0 %v896
        %v898 = vpop.xlane.xlu0 %897
        %v899 = vperm.slane %v154, 2
        %v900 = vperm.slane %v154, 6
        %v901 = vperm.slane %v155, 2
        %v902 = vperm.slane %v155, 6
        %v903 = vperm.slane %v156, 2
        %v904 = vperm.slane %v156, 6
        %v905 = vperm.slane %v157, 2
        %v906 = vperm.slane %v157, 6
        %v907 = vperm.slane %v158, 2
        %v908 = vperm.slane %v158, 6
        %v909 = vperm.slane %v159, 2
        %v910 = vperm.slane %v159, 6
        %v911 = vperm.slane %v160, 2
        %v912 = vperm.slane %v160, 6
        %v913 = vperm.slane %v161, 2
        %v914 = vperm.slane %v161, 6
        %v915 = vperm.slane %v162, 2
        %v916 = vperm.slane %v162, 6
        %v917 = vperm.slane %v163, 2
        %v918 = vperm.slane %v163, 6
        %v919 = vperm.slane %v164, 2
        %v920 = vperm.slane %v164, 6
        %v921 = vperm.slane %v165, 2
        %v922 = vperm.slane %v165, 6
        %v923 = vperm.slane %v166, 2
        %v924 = vperm.slane %v166, 6
        %v925 = vperm.slane %v167, 2
        %v926 = vperm.slane %v167, 6
        %v927 = vperm.slane %v168, 2
        %v928 = vperm.slane %v168, 6
        %v929 = vperm.slane %v169, 2
        %v930 = vperm.slane %v169, 6
        %v963 = vperm.slane %v899, 2
        %v964 = vperm.slane %v900, 2
        %v965 = vperm.slane %v901, 2
        %v966 = vperm.slane %v902, 2
        %v967 = vperm.slane %v903, 2
        %v968 = vperm.slane %v904, 2
        %v969 = vperm.slane %v905, 2
        %v970 = vperm.slane %v906, 2
        %v971 = vperm.slane %v907, 2
        %v972 = vperm.slane %v908, 2
        %v973 = vperm.slane %v909, 2
        %v974 = vperm.slane %v910, 2
        %v975 = vperm.slane %v911, 2
        %v976 = vperm.slane %v912, 2
        %v977 = vperm.slane %v913, 2
        %v978 = vperm.slane %v914, 2
        %v979 = vperm.slane %v915, 2
        %v980 = vperm.slane %v916, 2
        %v981 = vperm.slane %v917, 2
        %v982 = vperm.slane %v918, 2
        %v983 = vperm.slane %v919, 2
        %v984 = vperm.slane %v920, 2
        %v985 = vperm.slane %v921, 2
        %v986 = vperm.slane %v922, 2
        %v987 = vperm.slane %v923, 2
        %v988 = vperm.slane %v924, 2
        %v989 = vperm.slane %v925, 2
        %v990 = vperm.slane %v926, 2
        %v991 = vperm.slane %v927, 2
        %v992 = vperm.slane %v928, 2
        %v993 = vperm.slane %v929, 2
        %v994 = vperm.slane %v930, 2
        %v1027 = vrot.slane %v964, 4
        %v1028 = vrot.slane %v966, 4
        %v1029 = vrot.slane %v968, 4
        %v1030 = vrot.slane %v970, 4
        %v1031 = vrot.slane %v972, 4
        %v1032 = vrot.slane %v974, 4
        %v1033 = vrot.slane %v976, 4
        %v1034 = vrot.slane %v978, 4
        %v1035 = vrot.slane %v980, 4
        %v1036 = vrot.slane %v982, 4
        %v1037 = vrot.slane %v984, 4
        %v1038 = vrot.slane %v986, 4
        %v1039 = vrot.slane %v988, 4
        %v1040 = vrot.slane %v990, 4
        %v1041 = vrot.slane %v992, 4
        %v1042 = vrot.slane %v994, 4
        %v1043 = vsel %vm330, %v963, %v1027
        %v1044 = vsel %vm330, %v965, %v1028
        %v1045 = vsel %vm330, %v967, %v1029
        %v1046 = vsel %vm330, %v969, %v1030
        %v1047 = vsel %vm330, %v971, %v1031
        %v1048 = vsel %vm330, %v973, %v1032
        %v1049 = vsel %vm330, %v975, %v1033
        %v1050 = vsel %vm330, %v977, %v1034
        %v1051 = vsel %vm330, %v979, %v1035
        %v1052 = vsel %vm330, %v981, %v1036
        %v1053 = vsel %vm330, %v983, %v1037
        %v1054 = vsel %vm330, %v985, %v1038
        %v1055 = vsel %vm330, %v987, %v1039
        %v1056 = vsel %vm330, %v989, %v1040
        %v1057 = vsel %vm330, %v991, %v1041
        %v1058 = vsel %vm330, %v993, %v1042
        %v1075 = vmul.f32 %v154, %v1043
        %v1076 = vmul.f32 %v155, %v1044
        %v1077 = vmul.f32 %v156, %v1045
        %v1078 = vmul.f32 %v157, %v1046
        %v1079 = vmul.f32 %v158, %v1047
        %v1080 = vmul.f32 %v159, %v1048
        %v1081 = vmul.f32 %v160, %v1049
        %v1082 = vmul.f32 %v161, %v1050
        %v1083 = vmul.f32 %v162, %v1051
        %v1084 = vmul.f32 %v163, %v1052
        %v1085 = vmul.f32 %v164, %v1053
        %v1086 = vmul.f32 %v165, %v1054
        %v1087 = vmul.f32 %v166, %v1055
        %v1088 = vmul.f32 %v167, %v1056
        %v1089 = vmul.f32 %v168, %v1057
        %v1090 = vmul.f32 %v169, %v1058
        %1107 = vst [vmem:[#allocation1] ss:$2 sm:$0xff] %v1075
        %s1108 = scalar_lea.vmem [#allocation1], 16
        %1109 = vst [vmem:[%s1108] ss:$2 sm:$0xff] %v1076
        %s1110 = scalar_lea.vmem [#allocation1], 32
        %1111 = vst [vmem:[%s1110] ss:$2 sm:$0xff] %v1077
        %s1112 = scalar_lea.vmem [#allocation1], 48
        %1113 = vst [vmem:[%s1112] ss:$2 sm:$0xff] %v1078
        %v1114 = vld.sshfl [vmem:[#allocation1] sm:$0xff pattern:$0x75316420]
        %v1115 = vld.sshfl [vmem:[#allocation1 + $0x8] sm:$0xff pattern:$0x75316420]
        %v1116 = vld.sshfl [vmem:[#allocation1 + $0x10] sm:$0xff pattern:$0x75316420]
        %v1117 = vld.sshfl [vmem:[#allocation1 + $0x18] sm:$0xff pattern:$0x75316420]
        %v1118 = vld.sshfl [vmem:[#allocation1 + $0x20] sm:$0xff pattern:$0x75316420]
        %v1119 = vld.sshfl [vmem:[#allocation1 + $0x28] sm:$0xff pattern:$0x75316420]
        %v1120 = vld.sshfl [vmem:[#allocation1 + $0x30] sm:$0xff pattern:$0x75316420]
        %v1121 = vld.sshfl [vmem:[#allocation1 + $0x38] sm:$0xff pattern:$0x75316420]
        %1122 = vst [vmem:[#allocation1] ss:$2 sm:$0xff] %v1079
        %1123 = vst [vmem:[%s1108] ss:$2 sm:$0xff] %v1080
        %1124 = vst [vmem:[%s1110] ss:$2 sm:$0xff] %v1081
        %1125 = vst [vmem:[%s1112] ss:$2 sm:$0xff] %v1082
        %v1126 = vld.sshfl [vmem:[#allocation1] sm:$0xff pattern:$0x75316420]
        %v1127 = vld.sshfl [vmem:[#allocation1 + $0x8] sm:$0xff pattern:$0x75316420]
        %v1128 = vld.sshfl [vmem:[#allocation1 + $0x10] sm:$0xff pattern:$0x75316420]
        %v1129 = vld.sshfl [vmem:[#allocation1 + $0x18] sm:$0xff pattern:$0x75316420]
        %v1130 = vld.sshfl [vmem:[#allocation1 + $0x20] sm:$0xff pattern:$0x75316420]
        %v1131 = vld.sshfl [vmem:[#allocation1 + $0x28] sm:$0xff pattern:$0x75316420]
        %v1132 = vld.sshfl [vmem:[#allocation1 + $0x30] sm:$0xff pattern:$0x75316420]
        %v1133 = vld.sshfl [vmem:[#allocation1 + $0x38] sm:$0xff pattern:$0x75316420]
        %1134 = vst [vmem:[#allocation1] ss:$2 sm:$0xff] %v1083
        %1135 = vst [vmem:[%s1108] ss:$2 sm:$0xff] %v1084
        %1136 = vst [vmem:[%s1110] ss:$2 sm:$0xff] %v1085
        %1137 = vst [vmem:[%s1112] ss:$2 sm:$0xff] %v1086
        %v1138 = vld.sshfl [vmem:[#allocation1] sm:$0xff pattern:$0x75316420]
        %v1139 = vld.sshfl [vmem:[#allocation1 + $0x8] sm:$0xff pattern:$0x75316420]
        %v1140 = vld.sshfl [vmem:[#allocation1 + $0x10] sm:$0xff pattern:$0x75316420]
        %v1141 = vld.sshfl [vmem:[#allocation1 + $0x18] sm:$0xff pattern:$0x75316420]
        %v1142 = vld.sshfl [vmem:[#allocation1 + $0x20] sm:$0xff pattern:$0x75316420]
        %v1143 = vld.sshfl [vmem:[#allocation1 + $0x28] sm:$0xff pattern:$0x75316420]
        %v1144 = vld.sshfl [vmem:[#allocation1 + $0x30] sm:$0xff pattern:$0x75316420]
        %v1145 = vld.sshfl [vmem:[#allocation1 + $0x38] sm:$0xff pattern:$0x75316420]
        %1146 = vst [vmem:[#allocation1] ss:$2 sm:$0xff] %v1087
        %1147 = vst [vmem:[%s1108] ss:$2 sm:$0xff] %v1088
        %1148 = vst [vmem:[%s1110] ss:$2 sm:$0xff] %v1089
        %1149 = vst [vmem:[%s1112] ss:$2 sm:$0xff] %v1090
        %v1150 = vld.sshfl [vmem:[#allocation1] sm:$0xff pattern:$0x75316420]
        %v1151 = vld.sshfl [vmem:[#allocation1 + $0x8] sm:$0xff pattern:$0x75316420]
        %v1152 = vld.sshfl [vmem:[#allocation1 + $0x10] sm:$0xff pattern:$0x75316420]
        %v1153 = vld.sshfl [vmem:[#allocation1 + $0x18] sm:$0xff pattern:$0x75316420]
        %v1154 = vld.sshfl [vmem:[#allocation1 + $0x20] sm:$0xff pattern:$0x75316420]
        %v1155 = vld.sshfl [vmem:[#allocation1 + $0x28] sm:$0xff pattern:$0x75316420]
        %v1156 = vld.sshfl [vmem:[#allocation1 + $0x30] sm:$0xff pattern:$0x75316420]
        %v1157 = vld.sshfl [vmem:[#allocation1 + $0x38] sm:$0xff pattern:$0x75316420]
        %v1190 = vsel %vm330, %v1114, 0.0
        %v1191 = vsel %vm330, %v1115, 0.0
        %v1192 = vadd.f32 %v1190, %v1191
        %v1193 = vsel %vm330, %v1116, 0.0
        %v1194 = vadd.f32 %v1192, %v1193
        %v1195 = vsel %vm330, %v1117, 0.0
        %v1196 = vadd.f32 %v1194, %v1195
        %v1197 = vsel %vm330, %v1118, 0.0
        %v1198 = vadd.f32 %v1196, %v1197
        %v1199 = vsel %vm330, %v1119, 0.0
        %v1200 = vadd.f32 %v1198, %v1199
        %v1201 = vsel %vm330, %v1120, 0.0
        %v1202 = vadd.f32 %v1200, %v1201
        %v1203 = vsel %vm330, %v1121, 0.0
        %v1204 = vadd.f32 %v1202, %v1203
        %v1205 = vsel %vm330, %v1126, 0.0
        %v1206 = vadd.f32 %v1204, %v1205
        %v1207 = vsel %vm330, %v1127, 0.0
        %v1208 = vadd.f32 %v1206, %v1207
        %v1209 = vsel %vm330, %v1128, 0.0
        %v1210 = vadd.f32 %v1208, %v1209
        %v1211 = vsel %vm330, %v1129, 0.0
        %v1212 = vadd.f32 %v1210, %v1211
        %v1213 = vsel %vm330, %v1130, 0.0
        %v1214 = vadd.f32 %v1212, %v1213
        %v1215 = vsel %vm330, %v1131, 0.0
        %v1216 = vadd.f32 %v1214, %v1215
        %v1217 = vsel %vm330, %v1132, 0.0
        %v1218 = vadd.f32 %v1216, %v1217
        %v1219 = vsel %vm330, %v1133, 0.0
        %v1220 = vadd.f32 %v1218, %v1219
        %v1221 = vsel %vm330, %v1138, 0.0
        %v1222 = vadd.f32 %v1220, %v1221
        %v1223 = vsel %vm330, %v1139, 0.0
        %v1224 = vadd.f32 %v1222, %v1223
        %v1225 = vsel %vm330, %v1140, 0.0
        %v1226 = vadd.f32 %v1224, %v1225
        %v1227 = vsel %vm330, %v1141, 0.0
        %v1228 = vadd.f32 %v1226, %v1227
        %v1229 = vsel %vm330, %v1142, 0.0
        %v1230 = vadd.f32 %v1228, %v1229
        %v1231 = vsel %vm330, %v1143, 0.0
        %v1232 = vadd.f32 %v1230, %v1231
        %v1233 = vsel %vm330, %v1144, 0.0
        %v1234 = vadd.f32 %v1232, %v1233
        %v1235 = vsel %vm330, %v1145, 0.0
        %v1236 = vadd.f32 %v1234, %v1235
        %v1237 = vsel %vm330, %v1150, 0.0
        %v1238 = vadd.f32 %v1236, %v1237
        %v1239 = vsel %vm330, %v1151, 0.0
        %v1240 = vadd.f32 %v1238, %v1239
        %v1241 = vsel %vm330, %v1152, 0.0
        %v1242 = vadd.f32 %v1240, %v1241
        %v1243 = vsel %vm330, %v1153, 0.0
        %v1244 = vadd.f32 %v1242, %v1243
        %v1245 = vsel %vm330, %v1154, 0.0
        %v1246 = vadd.f32 %v1244, %v1245
        %v1247 = vsel %vm330, %v1155, 0.0
        %v1248 = vadd.f32 %v1246, %v1247
        %v1249 = vsel %vm330, %v1156, 0.0
        %v1250 = vadd.f32 %v1248, %v1249
        %v1251 = vsel %vm330, %v1157, 0.0
        %v1252 = vadd.f32 %v1250, %v1251
        %1253 = vadd.xlane.f32.xlu0 %v1252
        %v1254 = vpop.xlane.xlu0 %1253
        %v1255 = vperm.slane %v154, 3
        %v1256 = vperm.slane %v154, 7
        %v1257 = vperm.slane %v155, 3
        %v1258 = vperm.slane %v155, 7
        %v1259 = vperm.slane %v156, 3
        %v1260 = vperm.slane %v156, 7
        %v1261 = vperm.slane %v157, 3
        %v1262 = vperm.slane %v157, 7
        %v1263 = vperm.slane %v158, 3
        %v1264 = vperm.slane %v158, 7
        %v1265 = vperm.slane %v159, 3
        %v1266 = vperm.slane %v159, 7
        %v1267 = vperm.slane %v160, 3
        %v1268 = vperm.slane %v160, 7
        %v1269 = vperm.slane %v161, 3
        %v1270 = vperm.slane %v161, 7
        %v1271 = vperm.slane %v162, 3
        %v1272 = vperm.slane %v162, 7
        %v1273 = vperm.slane %v163, 3
        %v1274 = vperm.slane %v163, 7
        %v1275 = vperm.slane %v164, 3
        %v1276 = vperm.slane %v164, 7
        %v1277 = vperm.slane %v165, 3
        %v1278 = vperm.slane %v165, 7
        %v1279 = vperm.slane %v166, 3
        %v1280 = vperm.slane %v166, 7
        %v1281 = vperm.slane %v167, 3
        %v1282 = vperm.slane %v167, 7
        %v1283 = vperm.slane %v168, 3
        %v1284 = vperm.slane %v168, 7
        %v1285 = vperm.slane %v169, 3
        %v1286 = vperm.slane %v169, 7
        %v1319 = vperm.slane %v1255, 3
        %v1320 = vperm.slane %v1256, 3
        %v1321 = vperm.slane %v1257, 3
        %v1322 = vperm.slane %v1258, 3
        %v1323 = vperm.slane %v1259, 3
        %v1324 = vperm.slane %v1260, 3
        %v1325 = vperm.slane %v1261, 3
        %v1326 = vperm.slane %v1262, 3
        %v1327 = vperm.slane %v1263, 3
        %v1328 = vperm.slane %v1264, 3
        %v1329 = vperm.slane %v1265, 3
        %v1330 = vperm.slane %v1266, 3
        %v1331 = vperm.slane %v1267, 3
        %v1332 = vperm.slane %v1268, 3
        %v1333 = vperm.slane %v1269, 3
        %v1334 = vperm.slane %v1270, 3
        %v1335 = vperm.slane %v1271, 3
        %v1336 = vperm.slane %v1272, 3
        %v1337 = vperm.slane %v1273, 3
        %v1338 = vperm.slane %v1274, 3
        %v1339 = vperm.slane %v1275, 3
        %v1340 = vperm.slane %v1276, 3
        %v1341 = vperm.slane %v1277, 3
        %v1342 = vperm.slane %v1278, 3
        %v1343 = vperm.slane %v1279, 3
        %v1344 = vperm.slane %v1280, 3
        %v1345 = vperm.slane %v1281, 3
        %v1346 = vperm.slane %v1282, 3
        %v1347 = vperm.slane %v1283, 3
        %v1348 = vperm.slane %v1284, 3
        %v1349 = vperm.slane %v1285, 3
        %v1350 = vperm.slane %v1286, 3
        %v1383 = vrot.slane %v1320, 4
        %v1384 = vrot.slane %v1322, 4
        %v1385 = vrot.slane %v1324, 4
        %v1386 = vrot.slane %v1326, 4
        %v1387 = vrot.slane %v1328, 4
        %v1388 = vrot.slane %v1330, 4
        %v1389 = vrot.slane %v1332, 4
        %v1390 = vrot.slane %v1334, 4
        %v1391 = vrot.slane %v1336, 4
        %v1392 = vrot.slane %v1338, 4
        %v1393 = vrot.slane %v1340, 4
        %v1394 = vrot.slane %v1342, 4
        %v1395 = vrot.slane %v1344, 4
        %v1396 = vrot.slane %v1346, 4
        %v1397 = vrot.slane %v1348, 4
        %v1398 = vrot.slane %v1350, 4
        %v1399 = vsel %vm330, %v1319, %v1383
        %v1400 = vsel %vm330, %v1321, %v1384
        %v1401 = vsel %vm330, %v1323, %v1385
        %v1402 = vsel %vm330, %v1325, %v1386
        %v1403 = vsel %vm330, %v1327, %v1387
        %v1404 = vsel %vm330, %v1329, %v1388
        %v1405 = vsel %vm330, %v1331, %v1389
        %v1406 = vsel %vm330, %v1333, %v1390
        %v1407 = vsel %vm330, %v1335, %v1391
        %v1408 = vsel %vm330, %v1337, %v1392
        %v1409 = vsel %vm330, %v1339, %v1393
        %v1410 = vsel %vm330, %v1341, %v1394
        %v1411 = vsel %vm330, %v1343, %v1395
        %v1412 = vsel %vm330, %v1345, %v1396
        %v1413 = vsel %vm330, %v1347, %v1397
        %v1414 = vsel %vm330, %v1349, %v1398
        %v1431 = vmul.f32 %v154, %v1399
        %v1432 = vmul.f32 %v155, %v1400
        %v1433 = vmul.f32 %v156, %v1401
        %v1434 = vmul.f32 %v157, %v1402
        %v1435 = vmul.f32 %v158, %v1403
        %v1436 = vmul.f32 %v159, %v1404
        %v1437 = vmul.f32 %v160, %v1405
        %v1438 = vmul.f32 %v161, %v1406
        %v1439 = vmul.f32 %v162, %v1407
        %v1440 = vmul.f32 %v163, %v1408
        %v1441 = vmul.f32 %v164, %v1409
        %v1442 = vmul.f32 %v165, %v1410
        %v1443 = vmul.f32 %v166, %v1411
        %v1444 = vmul.f32 %v167, %v1412
        %v1445 = vmul.f32 %v168, %v1413
        %v1446 = vmul.f32 %v169, %v1414
        %1463 = vst [vmem:[#allocation1] ss:$2 sm:$0xff] %v1431
        %s1464 = scalar_lea.vmem [#allocation1], 16
        %1465 = vst [vmem:[%s1464] ss:$2 sm:$0xff] %v1432
        %s1466 = scalar_lea.vmem [#allocation1], 32
        %1467 = vst [vmem:[%s1466] ss:$2 sm:$0xff] %v1433
        %s1468 = scalar_lea.vmem [#allocation1], 48
        %1469 = vst [vmem:[%s1468] ss:$2 sm:$0xff] %v1434
        %v1470 = vld.sshfl [vmem:[#allocation1] sm:$0xff pattern:$0x75316420]
        %v1471 = vld.sshfl [vmem:[#allocation1 + $0x8] sm:$0xff pattern:$0x75316420]
        %v1472 = vld.sshfl [vmem:[#allocation1 + $0x10] sm:$0xff pattern:$0x75316420]
        %v1473 = vld.sshfl [vmem:[#allocation1 + $0x18] sm:$0xff pattern:$0x75316420]
        %v1474 = vld.sshfl [vmem:[#allocation1 + $0x20] sm:$0xff pattern:$0x75316420]
        %v1475 = vld.sshfl [vmem:[#allocation1 + $0x28] sm:$0xff pattern:$0x75316420]
        %v1476 = vld.sshfl [vmem:[#allocation1 + $0x30] sm:$0xff pattern:$0x75316420]
        %v1477 = vld.sshfl [vmem:[#allocation1 + $0x38] sm:$0xff pattern:$0x75316420]
        %1478 = vst [vmem:[#allocation1] ss:$2 sm:$0xff] %v1435
        %1479 = vst [vmem:[%s1464] ss:$2 sm:$0xff] %v1436
        %1480 = vst [vmem:[%s1466] ss:$2 sm:$0xff] %v1437
        %1481 = vst [vmem:[%s1468] ss:$2 sm:$0xff] %v1438
        %v1482 = vld.sshfl [vmem:[#allocation1] sm:$0xff pattern:$0x75316420]
        %v1483 = vld.sshfl [vmem:[#allocation1 + $0x8] sm:$0xff pattern:$0x75316420]
        %v1484 = vld.sshfl [vmem:[#allocation1 + $0x10] sm:$0xff pattern:$0x75316420]
        %v1485 = vld.sshfl [vmem:[#allocation1 + $0x18] sm:$0xff pattern:$0x75316420]
        %v1486 = vld.sshfl [vmem:[#allocation1 + $0x20] sm:$0xff pattern:$0x75316420]
        %v1487 = vld.sshfl [vmem:[#allocation1 + $0x28] sm:$0xff pattern:$0x75316420]
        %v1488 = vld.sshfl [vmem:[#allocation1 + $0x30] sm:$0xff pattern:$0x75316420]
        %v1489 = vld.sshfl [vmem:[#allocation1 + $0x38] sm:$0xff pattern:$0x75316420]
        %1490 = vst [vmem:[#allocation1] ss:$2 sm:$0xff] %v1439
        %1491 = vst [vmem:[%s1464] ss:$2 sm:$0xff] %v1440
        %1492 = vst [vmem:[%s1466] ss:$2 sm:$0xff] %v1441
        %1493 = vst [vmem:[%s1468] ss:$2 sm:$0xff] %v1442
        %v1494 = vld.sshfl [vmem:[#allocation1] sm:$0xff pattern:$0x75316420]
        %v1495 = vld.sshfl [vmem:[#allocation1 + $0x8] sm:$0xff pattern:$0x75316420]
        %v1496 = vld.sshfl [vmem:[#allocation1 + $0x10] sm:$0xff pattern:$0x75316420]
        %v1497 = vld.sshfl [vmem:[#allocation1 + $0x18] sm:$0xff pattern:$0x75316420]
        %v1498 = vld.sshfl [vmem:[#allocation1 + $0x20] sm:$0xff pattern:$0x75316420]
        %v1499 = vld.sshfl [vmem:[#allocation1 + $0x28] sm:$0xff pattern:$0x75316420]
        %v1500 = vld.sshfl [vmem:[#allocation1 + $0x30] sm:$0xff pattern:$0x75316420]
        %v1501 = vld.sshfl [vmem:[#allocation1 + $0x38] sm:$0xff pattern:$0x75316420]
        %1502 = vst [vmem:[#allocation1] ss:$2 sm:$0xff] %v1443
        %1503 = vst [vmem:[%s1464] ss:$2 sm:$0xff] %v1444
        %1504 = vst [vmem:[%s1466] ss:$2 sm:$0xff] %v1445
        %1505 = vst [vmem:[%s1468] ss:$2 sm:$0xff] %v1446
        %v1506 = vld.sshfl [vmem:[#allocation1] sm:$0xff pattern:$0x75316420]
        %v1507 = vld.sshfl [vmem:[#allocation1 + $0x8] sm:$0xff pattern:$0x75316420]
        %v1508 = vld.sshfl [vmem:[#allocation1 + $0x10] sm:$0xff pattern:$0x75316420]
        %v1509 = vld.sshfl [vmem:[#allocation1 + $0x18] sm:$0xff pattern:$0x75316420]
        %v1510 = vld.sshfl [vmem:[#allocation1 + $0x20] sm:$0xff pattern:$0x75316420]
        %v1511 = vld.sshfl [vmem:[#allocation1 + $0x28] sm:$0xff pattern:$0x75316420]
        %v1512 = vld.sshfl [vmem:[#allocation1 + $0x30] sm:$0xff pattern:$0x75316420]
        %v1513 = vld.sshfl [vmem:[#allocation1 + $0x38] sm:$0xff pattern:$0x75316420]
        %v1546 = vsel %vm330, %v1470, 0.0
        %v1547 = vsel %vm330, %v1471, 0.0
        %v1548 = vadd.f32 %v1546, %v1547
        %v1549 = vsel %vm330, %v1472, 0.0
        %v1550 = vadd.f32 %v1548, %v1549
        %v1551 = vsel %vm330, %v1473, 0.0
        %v1552 = vadd.f32 %v1550, %v1551
        %v1553 = vsel %vm330, %v1474, 0.0
        %v1554 = vadd.f32 %v1552, %v1553
        %v1555 = vsel %vm330, %v1475, 0.0
        %v1556 = vadd.f32 %v1554, %v1555
        %v1557 = vsel %vm330, %v1476, 0.0
        %v1558 = vadd.f32 %v1556, %v1557
        %v1559 = vsel %vm330, %v1477, 0.0
        %v1560 = vadd.f32 %v1558, %v1559
        %v1561 = vsel %vm330, %v1482, 0.0
        %v1562 = vadd.f32 %v1560, %v1561
        %v1563 = vsel %vm330, %v1483, 0.0
        %v1564 = vadd.f32 %v1562, %v1563
        %v1565 = vsel %vm330, %v1484, 0.0
        %v1566 = vadd.f32 %v1564, %v1565
        %v1567 = vsel %vm330, %v1485, 0.0
        %v1568 = vadd.f32 %v1566, %v1567
        %v1569 = vsel %vm330, %v1486, 0.0
        %v1570 = vadd.f32 %v1568, %v1569
        %v1571 = vsel %vm330, %v1487, 0.0
        %v1572 = vadd.f32 %v1570, %v1571
        %v1573 = vsel %vm330, %v1488, 0.0
        %v1574 = vadd.f32 %v1572, %v1573
        %v1575 = vsel %vm330, %v1489, 0.0
        %v1576 = vadd.f32 %v1574, %v1575
        %v1577 = vsel %vm330, %v1494, 0.0
        %v1578 = vadd.f32 %v1576, %v1577
        %v1579 = vsel %vm330, %v1495, 0.0
        %v1580 = vadd.f32 %v1578, %v1579
        %v1581 = vsel %vm330, %v1496, 0.0
        %v1582 = vadd.f32 %v1580, %v1581
        %v1583 = vsel %vm330, %v1497, 0.0
        %v1584 = vadd.f32 %v1582, %v1583
        %v1585 = vsel %vm330, %v1498, 0.0
        %v1586 = vadd.f32 %v1584, %v1585
        %v1587 = vsel %vm330, %v1499, 0.0
        %v1588 = vadd.f32 %v1586, %v1587
        %v1589 = vsel %vm330, %v1500, 0.0
        %v1590 = vadd.f32 %v1588, %v1589
        %v1591 = vsel %vm330, %v1501, 0.0
        %v1592 = vadd.f32 %v1590, %v1591
        %v1593 = vsel %vm330, %v1506, 0.0
        %v1594 = vadd.f32 %v1592, %v1593
        %v1595 = vsel %vm330, %v1507, 0.0
        %v1596 = vadd.f32 %v1594, %v1595
        %v1597 = vsel %vm330, %v1508, 0.0
        %v1598 = vadd.f32 %v1596, %v1597
        %v1599 = vsel %vm330, %v1509, 0.0
        %v1600 = vadd.f32 %v1598, %v1599
        %v1601 = vsel %vm330, %v1510, 0.0
        %v1602 = vadd.f32 %v1600, %v1601
        %v1603 = vsel %vm330, %v1511, 0.0
        %v1604 = vadd.f32 %v1602, %v1603
        %v1605 = vsel %vm330, %v1512, 0.0
        %v1606 = vadd.f32 %v1604, %v1605
        %v1607 = vsel %vm330, %v1513, 0.0
        %v1608 = vadd.f32 %v1606, %v1607
        %1609 = vadd.xlane.f32.xlu0 %v1608
        %v1610 = vpop.xlane.xlu0 %1609
        %1611 = vst [vmem:[#allocation1] ss:$2 sm:$0xff] %v154
        %s1612 = scalar_lea.vmem [#allocation1], 16
        %1613 = vst [vmem:[%s1612] ss:$2 sm:$0xff] %v155
        %s1614 = scalar_lea.vmem [#allocation1], 32
        %1615 = vst [vmem:[%s1614] ss:$2 sm:$0xff] %v156
        %s1616 = scalar_lea.vmem [#allocation1], 48
        %1617 = vst [vmem:[%s1616] ss:$2 sm:$0xff] %v157
        %v1618 = vld.sshfl [vmem:[#allocation1] sm:$0xff pattern:$0x75316420]
        %v1619 = vld.sshfl [vmem:[#allocation1 + $0x8] sm:$0xff pattern:$0x75316420]
        %v1620 = vld.sshfl [vmem:[#allocation1 + $0x10] sm:$0xff pattern:$0x75316420]
        %v1621 = vld.sshfl [vmem:[#allocation1 + $0x18] sm:$0xff pattern:$0x75316420]
        %v1622 = vld.sshfl [vmem:[#allocation1 + $0x20] sm:$0xff pattern:$0x75316420]
        %v1623 = vld.sshfl [vmem:[#allocation1 + $0x28] sm:$0xff pattern:$0x75316420]
        %v1624 = vld.sshfl [vmem:[#allocation1 + $0x30] sm:$0xff pattern:$0x75316420]
        %v1625 = vld.sshfl [vmem:[#allocation1 + $0x38] sm:$0xff pattern:$0x75316420]
        %1626 = vst [vmem:[#allocation1] ss:$2 sm:$0xff] %v158
        %1627 = vst [vmem:[%s1612] ss:$2 sm:$0xff] %v159
        %1628 = vst [vmem:[%s1614] ss:$2 sm:$0xff] %v160
        %1629 = vst [vmem:[%s1616] ss:$2 sm:$0xff] %v161
        %v1630 = vld.sshfl [vmem:[#allocation1] sm:$0xff pattern:$0x75316420]
        %v1631 = vld.sshfl [vmem:[#allocation1 + $0x8] sm:$0xff pattern:$0x75316420]
        %v1632 = vld.sshfl [vmem:[#allocation1 + $0x10] sm:$0xff pattern:$0x75316420]
        %v1633 = vld.sshfl [vmem:[#allocation1 + $0x18] sm:$0xff pattern:$0x75316420]
        %v1634 = vld.sshfl [vmem:[#allocation1 + $0x20] sm:$0xff pattern:$0x75316420]
        %v1635 = vld.sshfl [vmem:[#allocation1 + $0x28] sm:$0xff pattern:$0x75316420]
        %v1636 = vld.sshfl [vmem:[#allocation1 + $0x30] sm:$0xff pattern:$0x75316420]
        %v1637 = vld.sshfl [vmem:[#allocation1 + $0x38] sm:$0xff pattern:$0x75316420]
        %1638 = vst [vmem:[#allocation1] ss:$2 sm:$0xff] %v162
        %1639 = vst [vmem:[%s1612] ss:$2 sm:$0xff] %v163
        %1640 = vst [vmem:[%s1614] ss:$2 sm:$0xff] %v164
        %1641 = vst [vmem:[%s1616] ss:$2 sm:$0xff] %v165
        %v1642 = vld.sshfl [vmem:[#allocation1] sm:$0xff pattern:$0x75316420]
        %v1643 = vld.sshfl [vmem:[#allocation1 + $0x8] sm:$0xff pattern:$0x75316420]
        %v1644 = vld.sshfl [vmem:[#allocation1 + $0x10] sm:$0xff pattern:$0x75316420]
        %v1645 = vld.sshfl [vmem:[#allocation1 + $0x18] sm:$0xff pattern:$0x75316420]
        %v1646 = vld.sshfl [vmem:[#allocation1 + $0x20] sm:$0xff pattern:$0x75316420]
        %v1647 = vld.sshfl [vmem:[#allocation1 + $0x28] sm:$0xff pattern:$0x75316420]
        %v1648 = vld.sshfl [vmem:[#allocation1 + $0x30] sm:$0xff pattern:$0x75316420]
        %v1649 = vld.sshfl [vmem:[#allocation1 + $0x38] sm:$0xff pattern:$0x75316420]
        %1650 = vst [vmem:[#allocation1] ss:$2 sm:$0xff] %v166
        %1651 = vst [vmem:[%s1612] ss:$2 sm:$0xff] %v167
        %1652 = vst [vmem:[%s1614] ss:$2 sm:$0xff] %v168
        %1653 = vst [vmem:[%s1616] ss:$2 sm:$0xff] %v169
        %v1654 = vld.sshfl [vmem:[#allocation1] sm:$0xff pattern:$0x75316420]
        %v1655 = vld.sshfl [vmem:[#allocation1 + $0x8] sm:$0xff pattern:$0x75316420]
        %v1656 = vld.sshfl [vmem:[#allocation1 + $0x10] sm:$0xff pattern:$0x75316420]
        %v1657 = vld.sshfl [vmem:[#allocation1 + $0x18] sm:$0xff pattern:$0x75316420]
        %v1658 = vld.sshfl [vmem:[#allocation1 + $0x20] sm:$0xff pattern:$0x75316420]
        %v1659 = vld.sshfl [vmem:[#allocation1 + $0x28] sm:$0xff pattern:$0x75316420]
        %v1660 = vld.sshfl [vmem:[#allocation1 + $0x30] sm:$0xff pattern:$0x75316420]
        %v1661 = vld.sshfl [vmem:[#allocation1 + $0x38] sm:$0xff pattern:$0x75316420]
        %v1694 = vsel %vm330, %v1618, 0.0
        %v1695 = vsel %vm330, %v1619, 0.0
        %v1696 = vadd.f32 %v1694, %v1695
        %v1697 = vsel %vm330, %v1620, 0.0
        %v1698 = vadd.f32 %v1696, %v1697
        %v1699 = vsel %vm330, %v1621, 0.0
        %v1700 = vadd.f32 %v1698, %v1699
        %v1701 = vsel %vm330, %v1622, 0.0
        %v1702 = vadd.f32 %v1700, %v1701
        %v1703 = vsel %vm330, %v1623, 0.0
        %v1704 = vadd.f32 %v1702, %v1703
        %v1705 = vsel %vm330, %v1624, 0.0
        %v1706 = vadd.f32 %v1704, %v1705
        %v1707 = vsel %vm330, %v1625, 0.0
        %v1708 = vadd.f32 %v1706, %v1707
        %v1709 = vsel %vm330, %v1630, 0.0
        %v1710 = vadd.f32 %v1708, %v1709
        %v1711 = vsel %vm330, %v1631, 0.0
        %v1712 = vadd.f32 %v1710, %v1711
        %v1713 = vsel %vm330, %v1632, 0.0
        %v1714 = vadd.f32 %v1712, %v1713
        %v1715 = vsel %vm330, %v1633, 0.0
        %v1716 = vadd.f32 %v1714, %v1715
        %v1717 = vsel %vm330, %v1634, 0.0
        %v1718 = vadd.f32 %v1716, %v1717
        %v1719 = vsel %vm330, %v1635, 0.0
        %v1720 = vadd.f32 %v1718, %v1719
        %v1721 = vsel %vm330, %v1636, 0.0
        %v1722 = vadd.f32 %v1720, %v1721
        %v1723 = vsel %vm330, %v1637, 0.0
        %v1724 = vadd.f32 %v1722, %v1723
        %v1725 = vsel %vm330, %v1642, 0.0
        %v1726 = vadd.f32 %v1724, %v1725
        %v1727 = vsel %vm330, %v1643, 0.0
        %v1728 = vadd.f32 %v1726, %v1727
        %v1729 = vsel %vm330, %v1644, 0.0
        %v1730 = vadd.f32 %v1728, %v1729
        %v1731 = vsel %vm330, %v1645, 0.0
        %v1732 = vadd.f32 %v1730, %v1731
        %v1733 = vsel %vm330, %v1646, 0.0
        %v1734 = vadd.f32 %v1732, %v1733
        %v1735 = vsel %vm330, %v1647, 0.0
        %v1736 = vadd.f32 %v1734, %v1735
        %v1737 = vsel %vm330, %v1648, 0.0
        %v1738 = vadd.f32 %v1736, %v1737
        %v1739 = vsel %vm330, %v1649, 0.0
        %v1740 = vadd.f32 %v1738, %v1739
        %v1741 = vsel %vm330, %v1654, 0.0
        %v1742 = vadd.f32 %v1740, %v1741
        %v1743 = vsel %vm330, %v1655, 0.0
        %v1744 = vadd.f32 %v1742, %v1743
        %v1745 = vsel %vm330, %v1656, 0.0
        %v1746 = vadd.f32 %v1744, %v1745
        %v1747 = vsel %vm330, %v1657, 0.0
        %v1748 = vadd.f32 %v1746, %v1747
        %v1749 = vsel %vm330, %v1658, 0.0
        %v1750 = vadd.f32 %v1748, %v1749
        %v1751 = vsel %vm330, %v1659, 0.0
        %v1752 = vadd.f32 %v1750, %v1751
        %v1753 = vsel %vm330, %v1660, 0.0
        %v1754 = vadd.f32 %v1752, %v1753
        %v1755 = vsel %vm330, %v1661, 0.0
        %v1756 = vadd.f32 %v1754, %v1755
        %1757 = vadd.xlane.f32.xlu0 %v1756
        %v1758 = vpop.xlane.xlu0 %1757
        %vm1759 = vcmask 7168
        %v1760 = vsel %vm1759, %v542, %v898
        %vm1761 = vcmask 15360
        %v1762 = vsel %vm1761, %v1760, %v1254
        %vm1763 = vcmask 23552
        %v1764 = vsel %vm1763, %v1762, %v1610
        %vm1765 = vcmask 31744
        %v1766 = vsel %vm1765, %v1764, %v1758
        %vm1767 = vcmask 35840
        %1768 = vst.msk [vmem:[%s152] sm:$0xf] %vm1767, %v1766
        %s1769 = sand.u32 %s68, 1
        %s1770 = scalar_lea.sflag [#allocation4], %s1769
        %s1771 = sand.u32 %s68, 1
        %s1772 = smul.addr %s1771, 4
        %s1773 = scalar_lea.vmem [#allocation5], %s1772
        // Predicated region
        $region29: #{tpu_custom_call.1} parent=23 // pred_check
          %p1774 = pneg %p78
        $region30: #{tpu_custom_call.1} parent=23 // pred_check_branch
          %1776 = sbr.rel (%p1774) target = $region32
        $region31: #{tpu_custom_call.1} parent=23 // pred_region
          %1778 = vsyncadd %s1770, 0
          %s1779 = sadd.s32 %s23, %s22
          %s1780 = smul.addr %s1779, 4
          %s1781 = scalar_lea.hbm %s1, %s1780
          %s1783 = sshll.u32 %s1773, 4
          %s1784 = int_to_ptr.vmem [resolvable:$true] %s1783
          %s1785 = sshll.u32 %s1781, 4
          %s1786 = int_to_ptr.hbm [resolvable:$true] %s1785
          %1788 = dma.vmem_to_hbm [thread:$0]  %s1784, 64, %s1786, %s1770
        $region32: #{tpu_custom_call.1} parent=23 // pred_fallthru
          _
      $region24: #{tpu_custom_call.1} parent=5 // pred_fallthru
        _
      %p1789 = scmp.le.s32.totalorder 2, %s13
      // Predicated region
      $region33: #{tpu_custom_call.1} parent=5 // pred_check
        %p1790 = pneg %p1789
      $region34: #{tpu_custom_call.1} parent=5 // pred_check_branch
        %1792 = sbr.rel (%p1790) target = $region36
      $region35: #{tpu_custom_call.1} parent=5 // pred_region
        %s1793 = ssub.s32 %s13, 2
        // Predicated region
        $region37: #{tpu_custom_call.1} parent=35 // pred_check
          %p1794 = pneg %p84
        $region38: #{tpu_custom_call.1} parent=35 // pred_check_branch
          %1796 = sbr.rel (%p1794) target = $region40
        $region39: #{tpu_custom_call.1} parent=35 // pred_region
          %s1797 = sand.u32 %s69, 1
          %s1798 = scalar_lea.sflag [#allocation4], %s1797
          %s1799 = sand.u32 %s69, 1
          %s1800 = smul.addr %s1799, 4
          %s1801 = scalar_lea.vmem [#allocation5], %s1800
          %1803 = dma.done %s1798, 64
        $region40: #{tpu_custom_call.1} parent=35 // pred_fallthru
          _
      $region36: #{tpu_custom_call.1} parent=5 // pred_fallthru
        _
    $region6: #{tpu_custom_call.1} parent=1 // loop_footer
      %s17 = sadd.s32 1, %s13
    $region7: #{tpu_custom_call.1} parent=1 // loop_footer_branch
      %12 = sbr.rel target = $region3
    $region8: #{tpu_custom_call.1} parent=1 // loop_exit
      _
    %1804 = vsyncpa [#allocation3], 1
    %s1805 = scalar_lea.sflag [#allocation3], 1
    %1806 = vsyncpa %s1805, 1
    %1807 = vsyncpa [#allocation4], 1
    %s1808 = scalar_lea.sflag [#allocation4], 1
    %1809 = vsyncpa %s1808, 1

</llo_original>
